<compile_context>
chip_gen: v6e
topology: v6e:2x2x1
jax: 0.10.0
libtpu: 0.0.40
codegen_flags: <defaults>
</compile_context>

<pallas_src>
import functools
import math

import jax
import jax.numpy as jnp
from jax.experimental import pallas as pl
from jax.experimental.pallas import tpu as pltpu


def _round_up(n, m):
    return ((n + m - 1) // m) * m


def _nbytes(shape, dtype):
    n = 1
    for d in shape:
        n *= d
    return n * jnp.dtype(dtype).itemsize


def _tpu_vmem_budget_and_cores():
    """Usable VMEM budget (with headroom) and TensorCores-per-chip."""
    try:
        vmem_bytes = int(pltpu.get_tpu_info().vmem_capacity_bytes)
    except Exception:
        vmem_bytes = 64 << 20  # conservative (v7x-sized) fallback
    kind = ""
    try:
        kind = jax.devices()[0].device_kind.lower()
    except Exception:
        pass
    num_tc = 2 if ("v7" in kind or "7x" in kind) else 1  # v7x: 2 TC/chip
    # Leave ~15% headroom for compiler-internal scratch.
    return int(vmem_bytes * 0.85), num_tc


def _mlp_kernel(x_ref, w1_ref, bgb_ref, w2_ref, b2_ref, o_ref, *, eps, hidden_true):
    # x_ref:   (row_tile, in_p)     row tile, lane-dense padded K
    # w1_ref:  (in_p, hid_p)        zero-padded rows/cols
    # bgb_ref: (3, hid_p)           rows = [b1, gamma, beta], zero-padded cols
    # w2_ref:  (hid_p, out_p)       zero-padded rows/cols
    # b2_ref:  (1, out_p)           zero-padded cols
    x = x_ref[...]

    # fc1: native-dtype operands on the MXU, f32 accumulation. Padded K rows of
    # w1 are zero, so the padded x lanes contribute exactly nothing.
    h = jnp.dot(x, w1_ref[...], preferred_element_type=jnp.float32)

    bgb = bgb_ref[...].astype(jnp.float32)
    h = h + bgb[0:1, :]  # + b1 (padded lanes of h stay exactly 0)

    # LayerNorm over the TRUE hidden width (two-pass variance for stability).
    hid_p = h.shape[-1]
    inv_n = jnp.float32(1.0 / hidden_true)
    mean = jnp.sum(h, axis=-1, keepdims=True) * inv_n  # padded lanes of h are 0
    centered = h - mean
    if hid_p != hidden_true:
        col = jax.lax.broadcasted_iota(jnp.int32, h.shape, 1)
        centered = jnp.where(col < hidden_true, centered, 0.0)
    var = jnp.sum(centered * centered, axis=-1, keepdims=True) * inv_n
    hn = centered * jax.lax.rsqrt(var + eps)
    # gamma/beta are zero-padded, so padded lanes remain exactly 0 here.
    hn = hn * bgb[1:2, :] + bgb[2:3, :]

    # ReLU
    hn = jnp.maximum(hn, 0.0)

    # fc2: cast activation to the weight dtype, f32 accumulation on the MXU.
    hn = hn.astype(w2_ref.dtype)
    out = jnp.dot(hn, w2_ref[...], preferred_element_type=jnp.float32)
    out = out + b2_ref[...].astype(jnp.float32)
    o_ref[...] = out.astype(o_ref.dtype)


def pad_mlp_params(params):
    """Pad params to 128-multiples ONCE (hoisted out of the per-call path)."""
    w1, b1, gamma, beta, w2, b2 = params
    input_size, hidden = w1.shape
    output_size = w2.shape[1]
    in_p = _round_up(input_size, 128)
    hid_p = _round_up(hidden, 128)
    out_p = _round_up(output_size, 128)

    w1_p = jnp.pad(w1, ((0, in_p - input_size), (0, hid_p - hidden)))
    # Fold b1 / gamma / beta into one (3, hid_p) array -> single DMA per call.
    bgb = jnp.pad(jnp.stack([b1, gamma, beta], axis=0),
                  ((0, 0), (0, hid_p - hidden)))
    w2_p = jnp.pad(w2, ((0, hid_p - hidden), (0, out_p - output_size)))
    b2_p = jnp.pad(b2.reshape(1, output_size), ((0, 0), (0, out_p - output_size)))

    meta = dict(input_size=input_size, hidden=hidden, output_size=output_size,
                in_p=in_p, hid_p=hid_p, out_p=out_p)
    return (w1_p, bgb, w2_p, b2_p), meta


def mlp_pallas(x, padded_params, meta, *, row_tile=512, eps=1e-5):
    """x: [..., input_size] -> [..., output_size] using pre-padded params."""
    w1_p, bgb, w2_p, b2_p = padded_params
    input_size = meta["input_size"]
    hidden = meta["hidden"]
    output_size = meta["output_size"]
    in_p, hid_p, out_p = meta["in_p"], meta["hid_p"], meta["out_p"]
    assert x.shape[-1] == input_size

    lead_shape = x.shape[:-1]
    rows = 1
    for d in lead_shape:
        rows *= d
    x2d = x.reshape(rows, input_size)
    if in_p != input_size:
        # Lane-dense K: unmasked x loads, full-width MXU contraction for fc1.
        x2d = jnp.pad(x2d, ((0, 0), (0, in_p - input_size)))

    vmem_budget, num_tc = _tpu_vmem_budget_and_cores()

    itemsize = jnp.dtype(x.dtype).itemsize
    row_align = 8 * max(1, 4 // max(1, itemsize))   # 8 f32 / 16 bf16 / 32 int8

    # Resident (single-buffered) weight footprint + streamed tiles + f32 temps.
    weight_bytes = (_nbytes((in_p, hid_p), w1_p.dtype)
                    + _nbytes((3, hid_p), bgb.dtype)
                    + _nbytes((hid_p, out_p), w2_p.dtype)
                    + _nbytes((1, out_p), b2_p.dtype))

    def vmem_need(rt):
        return (weight_bytes
                + 2 * _nbytes((rt, in_p), x.dtype)        # x tile (double buf)
                + 2 * _nbytes((rt, out_p), x.dtype)       # out tile (double buf)
                + 4 * _nbytes((rt, hid_p), jnp.float32))  # in-kernel f32 temps

    # Big row tiles (amortize per-step overhead), shrunk to fit the budget.
    row_tile = max(row_align, _round_up(min(row_tile, rows), row_align))
    while row_tile > row_align and vmem_need(row_tile) > vmem_budget:
        row_tile = max(row_align, _round_up(row_tile // 2, row_align))

    n_steps = pl.cdiv(rows, row_tile)
    if num_tc >= 2 and rows > row_align and n_steps % 2 != 0:
        # v7x megacore: even step count so both TensorCores get balanced work.
        target = max(2, _round_up(n_steps, 2))
        row_tile = max(row_align, _round_up(pl.cdiv(rows, target), row_align))
        n_steps = pl.cdiv(rows, row_tile)

    grid = (n_steps,)
    vmem_limit = int(min(max(int(1.5 * vmem_need(row_tile)) + (2 << 20), 16 << 20),
                         vmem_budget))

    kernel = functools.partial(_mlp_kernel, eps=eps, hidden_true=hidden)

    def run(single_buffer_weights):
        if single_buffer_weights:
            def wspec(shape):
                return pl.BlockSpec(shape, lambda i: (0, 0),
                                    pipeline_mode=pl.Buffered(1))
        else:
            def wspec(shape):
                return pl.BlockSpec(shape, lambda i: (0, 0))
        return pl.pallas_call(
            kernel,
            out_shape=jax.ShapeDtypeStruct((rows, out_p), x.dtype),
            grid_spec=pltpu.PrefetchScalarGridSpec(
                num_scalar_prefetch=0,
                grid=grid,
                in_specs=[
                    pl.BlockSpec((row_tile, in_p), lambda i: (i, 0)),  # x tile
                    wspec((in_p, hid_p)),                              # w1
                    wspec((3, hid_p)),                                 # b1/gamma/beta
                    wspec((hid_p, out_p)),                             # w2
                    wspec((1, out_p)),                                 # b2
                ],
                out_specs=pl.BlockSpec((row_tile, out_p), lambda i: (i, 0)),
            ),
            compiler_params=pltpu.CompilerParams(
                dimension_semantics=("parallel",),
                vmem_limit_bytes=vmem_limit,
            ),
        )(x2d, w1_p, bgb, w2_p, b2_p)

    try:
        out2d = run(single_buffer_weights=True)
    except Exception:
        # Fallback if this JAX build rejects Buffered(1) single-buffering.
        out2d = run(single_buffer_weights=False)

    if out_p != output_size:
        out2d = out2d[:, :output_size]
    return out2d.reshape(*lead_shape, output_size)


def init_mlp_params(key, input_size, output_size, hidden_size=64, dtype=jnp.float32):
    """Mirrors nn.Linear (uniform +/- 1/sqrt(fan_in)) and nn.LayerNorm init.
    Weights stored as [in, out] (torch W^T)."""
    k1, k2, k3, k4 = jax.random.split(key, 4)
    bound1 = 1.0 / math.sqrt(input_size)
    w1 = jax.random.uniform(k1, (input_size, hidden_size), dtype, -bound1, bound1)
    b1 = jax.random.uniform(k2, (hidden_size,), dtype, -bound1, bound1)
    gamma = jnp.ones((hidden_size,), dtype)
    beta = jnp.zeros((hidden_size,), dtype)
    bound2 = 1.0 / math.sqrt(hidden_size)
    w2 = jax.random.uniform(k3, (hidden_size, output_size), dtype, -bound2, bound2)
    b2 = jax.random.uniform(k4, (output_size,), dtype, -bound2, bound2)
    return (w1, b1, gamma, beta, w2, b2)


def mlp_reference(x, params, eps=1e-5):
    """Pure-JAX reference for correctness check."""
    w1, b1, gamma, beta, w2, b2 = params
    h = x @ w1 + b1
    mean = jnp.mean(h, axis=-1, keepdims=True)
    var = jnp.mean((h - mean) ** 2, axis=-1, keepdims=True)
    hn = (h - mean) / jnp.sqrt(var + eps)
    hn = hn * gamma + beta
    hn = jnp.maximum(hn, 0.0)
    return hn @ w2 + b2


if __name__ == "__main__":
    key = jax.random.PRNGKey(0)
    k_x, k_p = jax.random.split(key)

    batch, seq = 2, 8
    input_size, hidden_size, output_size = 16, 64, 32

    x = jax.random.normal(k_x, (batch, seq, input_size), jnp.float32)
    params = init_mlp_params(k_p, input_size, output_size, hidden_size)

    # Pad weights ONCE (hoisted out of the forward path), then run the kernel.
    padded_params, meta = pad_mlp_params(params)
    out = mlp_pallas(x, padded_params, meta)
    out = jax.block_until_ready(out)

    ref = mlp_reference(x, params)
    assert out.shape == (batch, seq, output_size)
    assert jnp.allclose(out, ref, atol=1e-4, rtol=1e-4)

    print("KERNEL_OK")
</pallas_src>

<mosaic_0001>
module attributes {stable_mosaic.version = 11 : i64} {
  func.func @_mlp_kernel(%arg0: i32, %arg1: memref<16x128xf32, #tpu.memory_space<vmem>>, %arg2: memref<128x128xf32, #tpu.memory_space<vmem>>, %arg3: memref<3x128xf32, #tpu.memory_space<vmem>>, %arg4: memref<128x128xf32, #tpu.memory_space<vmem>>, %arg5: memref<1x128xf32, #tpu.memory_space<vmem>>, %arg6: memref<16x128xf32, #tpu.memory_space<vmem>>) attributes {dimension_semantics = [#tpu.dimension_semantics<parallel>], iteration_bounds = array<i64: 1>, scalar_prefetch = 0 : i64, scratch_operands = 0 : i64, tpu.core_type = #tpu.core_type<tc>, window_params = [{transform_indices = @transform_0, window_bounds = array<i64: 16, 128>}, {pipeline_mode = #tpu.pipeline_mode<synchronous>, transform_indices = @transform_1, window_bounds = array<i64: 128, 128>}, {pipeline_mode = #tpu.pipeline_mode<synchronous>, transform_indices = @transform_2, window_bounds = array<i64: 3, 128>}, {pipeline_mode = #tpu.pipeline_mode<synchronous>, transform_indices = @transform_3, window_bounds = array<i64: 128, 128>}, {pipeline_mode = #tpu.pipeline_mode<synchronous>, transform_indices = @transform_4, window_bounds = array<i64: 1, 128>}, {transform_indices = @transform_5, window_bounds = array<i64: 16, 128>}]} {
    %c0 = arith.constant 0 : index
    %c0_0 = arith.constant 0 : index
    %0 = vector.load %arg1[%c0, %c0_0] : memref<16x128xf32, #tpu.memory_space<vmem>>, vector<16x128xf32>
    %c0_1 = arith.constant 0 : index
    %c0_2 = arith.constant 0 : index
    %1 = vector.load %arg2[%c0_1, %c0_2] : memref<128x128xf32, #tpu.memory_space<vmem>>, vector<128x128xf32>
    %cst = arith.constant dense<0.000000e+00> : vector<16x128xf32>
    %2 = tpu.matmul %0, %1, %cst {dimension_numbers = #tpu.dot_dimension_numbers<[1], [0], [0], [1], [0, 0, 1, 1], [], []>} : vector<16x128xf32>, vector<128x128xf32>, vector<16x128xf32> -> vector<16x128xf32>
    %c0_3 = arith.constant 0 : index
    %c0_4 = arith.constant 0 : index
    %3 = vector.load %arg3[%c0_3, %c0_4] : memref<3x128xf32, #tpu.memory_space<vmem>>, vector<3x128xf32>
    %4 = vector.extract_strided_slice %3 {offsets = [0, 0], sizes = [1, 128], strides = [1, 1]} : vector<3x128xf32> to vector<1x128xf32>
    %5 = vector.broadcast %4 : vector<1x128xf32> to vector<16x128xf32>
    %6 = arith.addf %2, %5 : vector<16x128xf32>
    %cst_5 = arith.constant dense<0.000000e+00> : vector<16xf32>
    %7 = vector.multi_reduction <add>, %6, %cst_5 [1] : vector<16x128xf32> to vector<16xf32>
    %8 = vector.shape_cast %7 : vector<16xf32> to vector<16x1xf32>
    %cst_6 = arith.constant 1.562500e-02 : f32
    %9 = vector.broadcast %cst_6 : f32 to vector<16x1xf32>
    %10 = arith.mulf %8, %9 : vector<16x1xf32>
    %11 = vector.broadcast %10 : vector<16x1xf32> to vector<16x128xf32>
    %12 = arith.subf %6, %11 : vector<16x128xf32>
    %13 = tpu.iota {dimensions = array<i32: 1>} : vector<16x128xi32>
    %c64_i32 = arith.constant 64 : i32
    %14 = vector.broadcast %c64_i32 : i32 to vector<16x128xi32>
    %15 = arith.cmpi slt, %13, %14 : vector<16x128xi32>
    %cst_7 = arith.constant 0.000000e+00 : f32
    %16 = vector.broadcast %cst_7 : f32 to vector<16x128xf32>
    %17 = arith.select %15, %12, %16 : vector<16x128xi1>, vector<16x128xf32>
    %18 = arith.mulf %17, %17 : vector<16x128xf32>
    %cst_8 = arith.constant dense<0.000000e+00> : vector<16xf32>
    %19 = vector.multi_reduction <add>, %18, %cst_8 [1] : vector<16x128xf32> to vector<16xf32>
    %20 = vector.shape_cast %19 : vector<16xf32> to vector<16x1xf32>
    %cst_9 = arith.constant 1.562500e-02 : f32
    %21 = vector.broadcast %cst_9 : f32 to vector<16x1xf32>
    %22 = arith.mulf %20, %21 : vector<16x1xf32>
    %cst_10 = arith.constant 9.99999974E-6 : f32
    %23 = vector.broadcast %cst_10 : f32 to vector<16x1xf32>
    %24 = arith.addf %22, %23 : vector<16x1xf32>
    %25 = math.rsqrt %24 : vector<16x1xf32>
    %26 = vector.broadcast %25 : vector<16x1xf32> to vector<16x128xf32>
    %27 = arith.mulf %17, %26 : vector<16x128xf32>
    %28 = vector.extract_strided_slice %3 {offsets = [1, 0], sizes = [1, 128], strides = [1, 1]} : vector<3x128xf32> to vector<1x128xf32>
    %29 = vector.broadcast %28 : vector<1x128xf32> to vector<16x128xf32>
    %30 = arith.mulf %27, %29 : vector<16x128xf32>
    %31 = vector.extract_strided_slice %3 {offsets = [2, 0], sizes = [1, 128], strides = [1, 1]} : vector<3x128xf32> to vector<1x128xf32>
    %32 = vector.broadcast %31 : vector<1x128xf32> to vector<16x128xf32>
    %33 = arith.addf %30, %32 : vector<16x128xf32>
    %cst_11 = arith.constant 0.000000e+00 : f32
    %34 = vector.broadcast %cst_11 : f32 to vector<16x128xf32>
    %35 = arith.maximumf %33, %34 : vector<16x128xf32>
    %c0_12 = arith.constant 0 : index
    %c0_13 = arith.constant 0 : index
    %36 = vector.load %arg4[%c0_12, %c0_13] : memref<128x128xf32, #tpu.memory_space<vmem>>, vector<128x128xf32>
    %cst_14 = arith.constant dense<0.000000e+00> : vector<16x128xf32>
    %37 = tpu.matmul %35, %36, %cst_14 {dimension_numbers = #tpu.dot_dimension_numbers<[1], [0], [0], [1], [0, 0, 1, 1], [], []>} : vector<16x128xf32>, vector<128x128xf32>, vector<16x128xf32> -> vector<16x128xf32>
    %c0_15 = arith.constant 0 : index
    %c0_16 = arith.constant 0 : index
    %38 = vector.load %arg5[%c0_15, %c0_16] : memref<1x128xf32, #tpu.memory_space<vmem>>, vector<1x128xf32>
    %39 = vector.broadcast %38 : vector<1x128xf32> to vector<16x128xf32>
    %40 = arith.addf %37, %39 : vector<16x128xf32>
    %c0_17 = arith.constant 0 : index
    %c0_18 = arith.constant 0 : index
    %41 = vector.load %arg6[%c0_17, %c0_18] : memref<16x128xf32, #tpu.memory_space<vmem>>, vector<16x128xf32>
    tpu.vector_store %arg6[%c0_17, %c0_18], %40 {strides = array<i32>} : memref<16x128xf32, #tpu.memory_space<vmem>>, vector<16x128xf32>,
    return
  }
  func.func @transform_0(%arg0: i32) -> (i32, i32) {
    %c0_i32 = arith.constant 0 : i32
    %c0_i32_0 = arith.constant 0 : i32
    return %arg0, %c0_i32 : i32, i32
  }
  func.func @transform_1(%arg0: i32) -> (i32, i32) {
    %c0_i32 = arith.constant 0 : i32
    %c0_i32_0 = arith.constant 0 : i32
    %c0_i32_1 = arith.constant 0 : i32
    return %c0_i32, %c0_i32_0 : i32, i32
  }
  func.func @transform_2(%arg0: i32) -> (i32, i32) {
    %c0_i32 = arith.constant 0 : i32
    %c0_i32_0 = arith.constant 0 : i32
    %c0_i32_1 = arith.constant 0 : i32
    return %c0_i32, %c0_i32_0 : i32, i32
  }
  func.func @transform_3(%arg0: i32) -> (i32, i32) {
    %c0_i32 = arith.constant 0 : i32
    %c0_i32_0 = arith.constant 0 : i32
    %c0_i32_1 = arith.constant 0 : i32
    return %c0_i32, %c0_i32_0 : i32, i32
  }
  func.func @transform_4(%arg0: i32) -> (i32, i32) {
    %c0_i32 = arith.constant 0 : i32
    %c0_i32_0 = arith.constant 0 : i32
    %c0_i32_1 = arith.constant 0 : i32
    return %c0_i32, %c0_i32_0 : i32, i32
  }
  func.func @transform_5(%arg0: i32) -> (i32, i32) {
    %c0_i32 = arith.constant 0 : i32
    %c0_i32_0 = arith.constant 0 : i32
    return %arg0, %c0_i32 : i32, i32
  }
}

module attributes {stable_mosaic.version = 11 : i64} {
  func.func @_mlp_kernel(%arg0: i32, %arg1: memref<16x128xf32, #tpu.memory_space<vmem>>, %arg2: memref<128x128xf32, #tpu.memory_space<vmem>>, %arg3: memref<3x128xf32, #tpu.memory_space<vmem>>, %arg4: memref<128x128xf32, #tpu.memory_space<vmem>>, %arg5: memref<1x128xf32, #tpu.memory_space<vmem>>, %arg6: memref<16x128xf32, #tpu.memory_space<vmem>>) attributes {dimension_semantics = [#tpu.dimension_semantics<parallel>], iteration_bounds = array<i64: 1>, scalar_prefetch = 0 : i64, scratch_operands = 0 : i64, tpu.core_type = #tpu.core_type<tc>, window_params = [{transform_indices = @transform_0, window_bounds = array<i64: 16, 128>}, {pipeline_mode = #tpu.pipeline_mode<synchronous>, transform_indices = @transform_1, window_bounds = array<i64: 128, 128>}, {pipeline_mode = #tpu.pipeline_mode<synchronous>, transform_indices = @transform_2, window_bounds = array<i64: 3, 128>}, {pipeline_mode = #tpu.pipeline_mode<synchronous>, transform_indices = @transform_3, window_bounds = array<i64: 128, 128>}, {pipeline_mode = #tpu.pipeline_mode<synchronous>, transform_indices = @transform_4, window_bounds = array<i64: 1, 128>}, {transform_indices = @transform_5, window_bounds = array<i64: 16, 128>}]} {
    %c0 = arith.constant 0 : index
    %c0_0 = arith.constant 0 : index
    %0 = vector.load %arg1[%c0, %c0_0] : memref<16x128xf32, #tpu.memory_space<vmem>>, vector<16x128xf32>
    %c0_1 = arith.constant 0 : index
    %c0_2 = arith.constant 0 : index
    %1 = vector.load %arg2[%c0_1, %c0_2] : memref<128x128xf32, #tpu.memory_space<vmem>>, vector<128x128xf32>
    %cst = arith.constant dense<0.000000e+00> : vector<16x128xf32>
    %2 = tpu.matmul %0, %1, %cst {dimension_numbers = #tpu.dot_dimension_numbers<[1], [0], [0], [1], [0, 0, 1, 1], [], []>} : vector<16x128xf32>, vector<128x128xf32>, vector<16x128xf32> -> vector<16x128xf32>
    %c0_3 = arith.constant 0 : index
    %c0_4 = arith.constant 0 : index
    %3 = vector.load %arg3[%c0_3, %c0_4] : memref<3x128xf32, #tpu.memory_space<vmem>>, vector<3x128xf32>
    %4 = vector.extract_strided_slice %3 {offsets = [0, 0], sizes = [1, 128], strides = [1, 1]} : vector<3x128xf32> to vector<1x128xf32>
    %5 = vector.broadcast %4 : vector<1x128xf32> to vector<16x128xf32>
    %6 = arith.addf %2, %5 : vector<16x128xf32>
    %cst_5 = arith.constant dense<0.000000e+00> : vector<16xf32>
    %7 = vector.multi_reduction <add>, %6, %cst_5 [1] : vector<16x128xf32> to vector<16xf32>
    %8 = vector.shape_cast %7 : vector<16xf32> to vector<16x1xf32>
    %cst_6 = arith.constant 1.562500e-02 : f32
    %9 = vector.broadcast %cst_6 : f32 to vector<16x1xf32>
    %10 = arith.mulf %8, %9 : vector<16x1xf32>
    %11 = vector.broadcast %10 : vector<16x1xf32> to vector<16x128xf32>
    %12 = arith.subf %6, %11 : vector<16x128xf32>
    %13 = tpu.iota {dimensions = array<i32: 1>} : vector<16x128xi32>
    %c64_i32 = arith.constant 64 : i32
    %14 = vector.broadcast %c64_i32 : i32 to vector<16x128xi32>
    %15 = arith.cmpi slt, %13, %14 : vector<16x128xi32>
    %cst_7 = arith.constant 0.000000e+00 : f32
    %16 = vector.broadcast %cst_7 : f32 to vector<16x128xf32>
    %17 = arith.select %15, %12, %16 : vector<16x128xi1>, vector<16x128xf32>
    %18 = arith.mulf %17, %17 : vector<16x128xf32>
    %cst_8 = arith.constant dense<0.000000e+00> : vector<16xf32>
    %19 = vector.multi_reduction <add>, %18, %cst_8 [1] : vector<16x128xf32> to vector<16xf32>
    %20 = vector.shape_cast %19 : vector<16xf32> to vector<16x1xf32>
    %cst_9 = arith.constant 1.562500e-02 : f32
    %21 = vector.broadcast %cst_9 : f32 to vector<16x1xf32>
    %22 = arith.mulf %20, %21 : vector<16x1xf32>
    %cst_10 = arith.constant 9.99999974E-6 : f32
    %23 = vector.broadcast %cst_10 : f32 to vector<16x1xf32>
    %24 = arith.addf %22, %23 : vector<16x1xf32>
    %25 = math.rsqrt %24 : vector<16x1xf32>
    %26 = vector.broadcast %25 : vector<16x1xf32> to vector<16x128xf32>
    %27 = arith.mulf %17, %26 : vector<16x128xf32>
    %28 = vector.extract_strided_slice %3 {offsets = [1, 0], sizes = [1, 128], strides = [1, 1]} : vector<3x128xf32> to vector<1x128xf32>
    %29 = vector.broadcast %28 : vector<1x128xf32> to vector<16x128xf32>
    %30 = arith.mulf %27, %29 : vector<16x128xf32>
    %31 = vector.extract_strided_slice %3 {offsets = [2, 0], sizes = [1, 128], strides = [1, 1]} : vector<3x128xf32> to vector<1x128xf32>
    %32 = vector.broadcast %31 : vector<1x128xf32> to vector<16x128xf32>
    %33 = arith.addf %30, %32 : vector<16x128xf32>
    %cst_11 = arith.constant 0.000000e+00 : f32
    %34 = vector.broadcast %cst_11 : f32 to vector<16x128xf32>
    %35 = arith.maximumf %33, %34 : vector<16x128xf32>
    %c0_12 = arith.constant 0 : index
    %c0_13 = arith.constant 0 : index
    %36 = vector.load %arg4[%c0_12, %c0_13] : memref<128x128xf32, #tpu.memory_space<vmem>>, vector<128x128xf32>
    %cst_14 = arith.constant dense<0.000000e+00> : vector<16x128xf32>
    %37 = tpu.matmul %35, %36, %cst_14 {dimension_numbers = #tpu.dot_dimension_numbers<[1], [0], [0], [1], [0, 0, 1, 1], [], []>} : vector<16x128xf32>, vector<128x128xf32>, vector<16x128xf32> -> vector<16x128xf32>
    %c0_15 = arith.constant 0 : index
    %c0_16 = arith.constant 0 : index
    %38 = vector.load %arg5[%c0_15, %c0_16] : memref<1x128xf32, #tpu.memory_space<vmem>>, vector<1x128xf32>
    %39 = vector.broadcast %38 : vector<1x128xf32> to vector<16x128xf32>
    %40 = arith.addf %37, %39 : vector<16x128xf32>
    %c0_17 = arith.constant 0 : index
    %c0_18 = arith.constant 0 : index
    %41 = vector.load %arg6[%c0_17, %c0_18] : memref<16x128xf32, #tpu.memory_space<vmem>>, vector<16x128xf32>
    tpu.vector_store %arg6[%c0_17, %c0_18], %40 {strides = array<i32>} : memref<16x128xf32, #tpu.memory_space<vmem>>, vector<16x128xf32>,
    return
  }
  func.func @transform_0(%arg0: i32) -> (i32, i32) {
    %c0_i32 = arith.constant 0 : i32
    %c0_i32_0 = arith.constant 0 : i32
    return %arg0, %c0_i32 : i32, i32
  }
  func.func @transform_1(%arg0: i32) -> (i32, i32) {
    %c0_i32 = arith.constant 0 : i32
    %c0_i32_0 = arith.constant 0 : i32
    %c0_i32_1 = arith.constant 0 : i32
    return %c0_i32, %c0_i32_0 : i32, i32
  }
  func.func @transform_2(%arg0: i32) -> (i32, i32) {
    %c0_i32 = arith.constant 0 : i32
    %c0_i32_0 = arith.constant 0 : i32
    %c0_i32_1 = arith.constant 0 : i32
    return %c0_i32, %c0_i32_0 : i32, i32
  }
  func.func @transform_3(%arg0: i32) -> (i32, i32) {
    %c0_i32 = arith.constant 0 : i32
    %c0_i32_0 = arith.constant 0 : i32
    %c0_i32_1 = arith.constant 0 : i32
    return %c0_i32, %c0_i32_0 : i32, i32
  }
  func.func @transform_4(%arg0: i32) -> (i32, i32) {
    %c0_i32 = arith.constant 0 : i32
    %c0_i32_0 = arith.constant 0 : i32
    %c0_i32_1 = arith.constant 0 : i32
    return %c0_i32, %c0_i32_0 : i32, i32
  }
  func.func @transform_5(%arg0: i32) -> (i32, i32) {
    %c0_i32 = arith.constant 0 : i32
    %c0_i32_0 = arith.constant 0 : i32
    return %arg0, %c0_i32 : i32, i32
  }
}

</mosaic_0001>

<llo_original>
// kernel: tpu_custom_call.1
$region0: #{tpu_custom_call.1}
  #allocation0 [shape = 'u32[]', space=smem, size = 0x4, offset = 0x4, fixed_abs, tag = 'smem constant byte address 0x4 - core index']
  #allocation1 [shape = 'u32[144,128]{1,0:T(1,128)}', space=vmem, size = 0x12000, scoped, tag = 'internal scratch']
  %s0 = inlined_call_operand.hbm [shape: f32[16,128], index: 0, kind: input, shape index: {}]
  %s1 = inlined_call_operand.hbm [shape: f32[128,128], index: 1, kind: input, shape index: {}]
  %s2 = inlined_call_operand.hbm [shape: f32[3,128], index: 2, kind: input, shape index: {}]
  %s3 = inlined_call_operand.hbm [shape: f32[128,128], index: 3, kind: input, shape index: {}]
  %s4 = inlined_call_operand.vmem [shape: f32[1,128], index: 4, kind: input, shape index: {}]
  %s5 = inlined_call_operand.hbm [shape: f32[16,128], index: 5, kind: output, shape index: {}]
  %s6 = sld [smem:[#allocation0]]
  $region46: #{tpu_custom_call.1} parent=0
    _
  %s8 = ssub.s32 1, %s6
  %s9 = scalar_select 0, %s8, %s6
  $region1: #{tpu_custom_call.1} parent=0
    #allocation2 [shape = 'u8[8192]{0}', space=vmem, size = 0x2000, scoped, tag = 'input window, operand 0, single buffered']
    #allocation3 [shape = 's32[1]{0}', space=sflag, size = 0x4, scoped, tag = 'scoped memory for tpu_custom_call.1']
    #allocation4 [shape = 's32[1]{0}', space=sflag, size = 0x4, scoped, tag = 'scoped memory for tpu_custom_call.1']
    #allocation5 [shape = 'u8[65536]{0}', space=vmem, size = 0x10000, scoped, tag = 'input window, operand 1, single buffered']
    #allocation6 [shape = 's32[1]{0}', space=sflag, size = 0x4, scoped, tag = 'scoped memory for tpu_custom_call.1']
    #allocation7 [shape = 'u8[2048]{0}', space=vmem, size = 0x800, scoped, tag = 'input window, operand 2, single buffered']
    #allocation8 [shape = 'u8[65536]{0}', space=vmem, size = 0x10000, scoped, tag = 'input window, operand 3, single buffered']
    #allocation9 [shape = 's32[1]{0}', space=sflag, size = 0x4, scoped, tag = 'scoped memory for tpu_custom_call.1']
    #allocation10 [shape = 'u8[8192]{0}', space=vmem, size = 0x2000, scoped, tag = 'output window, operand 0, single buffered']
    %10 = vsyncpa [#allocation3], 0
    %11 = vsyncpa [#allocation6], 0
    %12 = vsyncpa [#allocation9], 0
    %13 = vsyncpa [#allocation4], 0
    // Predicated region
    $region2: #{tpu_custom_call.1} parent=1 // pred_check
      _
    $region3: #{tpu_custom_call.1} parent=1 // pred_check_branch
      %15 = sbr.rel (0) target = $region5
    $region4: #{tpu_custom_call.1} parent=1 // pred_region
      %s17 = ssub.s32 256, 256
      %18 = vsyncadd [#allocation3], %s17
      %s19 = sshll.u32 [#allocation2], 4
      %s20 = int_to_ptr.vmem [resolvable:$true] %s19
      %25 = dma.hbm_to_vmem [thread:$0]  %s0, 256, %s20, [#allocation3], 128, 128, 8
    $region5: #{tpu_custom_call.1} parent=1 // pred_fallthru
      _
    // Predicated region
    $region6: #{tpu_custom_call.1} parent=1 // pred_check
      _
    $region7: #{tpu_custom_call.1} parent=1 // pred_check_branch
      %27 = sbr.rel (0) target = $region9
    $region8: #{tpu_custom_call.1} parent=1 // pred_region
      %s29 = ssub.s32 2048, 2048
      %30 = vsyncadd [#allocation6], %s29
      %s31 = sshll.u32 [#allocation5], 4
      %s32 = int_to_ptr.vmem [resolvable:$true] %s31
      %37 = dma.hbm_to_vmem [thread:$0]  %s1, 2048, %s32, [#allocation6], 128, 128, 8
    $region9: #{tpu_custom_call.1} parent=1 // pred_fallthru
      _
    // Predicated region
    $region10: #{tpu_custom_call.1} parent=1 // pred_check
      _
    $region11: #{tpu_custom_call.1} parent=1 // pred_check_branch
      %39 = sbr.rel (0) target = $region13
    $region12: #{tpu_custom_call.1} parent=1 // pred_region
      %s41 = ssub.s32 64, 64
      %42 = vsyncadd [#allocation6], %s41
      %s44 = sshll.u32 [#allocation7], 4
      %s45 = int_to_ptr.vmem [resolvable:$true] %s44
      %47 = dma.hbm_to_vmem [thread:$0]  %s2, 64, %s45, [#allocation6]
    $region13: #{tpu_custom_call.1} parent=1 // pred_fallthru
      _
    // Predicated region
    $region14: #{tpu_custom_call.1} parent=1 // pred_check
      _
    $region15: #{tpu_custom_call.1} parent=1 // pred_check_branch
      %49 = sbr.rel (0) target = $region17
    $region16: #{tpu_custom_call.1} parent=1 // pred_region
      %s51 = ssub.s32 2048, 2048
      %52 = vsyncadd [#allocation9], %s51
      %s53 = sshll.u32 [#allocation8], 4
      %s54 = int_to_ptr.vmem [resolvable:$true] %s53
      %59 = dma.hbm_to_vmem [thread:$0]  %s3, 2048, %s54, [#allocation9], 128, 128, 8
    $region17: #{tpu_custom_call.1} parent=1 // pred_fallthru
      _
    // Predicated region
    $region18: #{tpu_custom_call.1} parent=1 // pred_check
      _
    $region19: #{tpu_custom_call.1} parent=1 // pred_check_branch
      %61 = sbr.rel (0) target = $region21
    $region20: #{tpu_custom_call.1} parent=1 // pred_region
      _
    $region21: #{tpu_custom_call.1} parent=1 // pred_fallthru
      _
    // Predicated region
    $region22: #{tpu_custom_call.1} parent=1 // pred_check
      _
    $region23: #{tpu_custom_call.1} parent=1 // pred_check_branch
      %63 = sbr.rel (0) target = $region25
    $region24: #{tpu_custom_call.1} parent=1 // pred_region
      %64 = dma.done [#allocation3], 256
    $region25: #{tpu_custom_call.1} parent=1 // pred_fallthru
      _
    // Predicated region
    $region26: #{tpu_custom_call.1} parent=1 // pred_check
      _
    $region27: #{tpu_custom_call.1} parent=1 // pred_check_branch
      %66 = sbr.rel (0) target = $region29
    $region28: #{tpu_custom_call.1} parent=1 // pred_region
      %67 = dma.done [#allocation6], 2048
    $region29: #{tpu_custom_call.1} parent=1 // pred_fallthru
      _
    // Predicated region
    $region30: #{tpu_custom_call.1} parent=1 // pred_check
      _
    $region31: #{tpu_custom_call.1} parent=1 // pred_check_branch
      %69 = sbr.rel (0) target = $region33
    $region32: #{tpu_custom_call.1} parent=1 // pred_region
      %70 = dma.done [#allocation6], 64
    $region33: #{tpu_custom_call.1} parent=1 // pred_fallthru
      _
    // Predicated region
    $region34: #{tpu_custom_call.1} parent=1 // pred_check
      _
    $region35: #{tpu_custom_call.1} parent=1 // pred_check_branch
      %72 = sbr.rel (0) target = $region37
    $region36: #{tpu_custom_call.1} parent=1 // pred_region
      %73 = dma.done [#allocation9], 2048
    $region37: #{tpu_custom_call.1} parent=1 // pred_fallthru
      _
    %v74 = vld [vmem:[#allocation2] sm:$0xff]
    %v75 = vld [vmem:[#allocation2 + $0x8] sm:$0xff]
    %v76 = vld [vmem:[#allocation5] sm:$0xff]
    %v77 = vld [vmem:[#allocation5 + $0x8] sm:$0xff]
    %v78 = vld [vmem:[#allocation5 + $0x10] sm:$0xff]
    %v79 = vld [vmem:[#allocation5 + $0x18] sm:$0xff]
    %v80 = vld [vmem:[#allocation5 + $0x20] sm:$0xff]
    %v81 = vld [vmem:[#allocation5 + $0x28] sm:$0xff]
    %v82 = vld [vmem:[#allocation5 + $0x30] sm:$0xff]
    %v83 = vld [vmem:[#allocation5 + $0x38] sm:$0xff]
    %v84 = vld [vmem:[#allocation5 + $0x40] sm:$0xff]
    %v85 = vld [vmem:[#allocation5 + $0x48] sm:$0xff]
    %v86 = vld [vmem:[#allocation5 + $0x50] sm:$0xff]
    %v87 = vld [vmem:[#allocation5 + $0x58] sm:$0xff]
    %v88 = vld [vmem:[#allocation5 + $0x60] sm:$0xff]
    %v89 = vld [vmem:[#allocation5 + $0x68] sm:$0xff]
    %v90 = vld [vmem:[#allocation5 + $0x70] sm:$0xff]
    %v91 = vld [vmem:[#allocation5 + $0x78] sm:$0xff]
    %v92 = vld [vmem:[#allocation7] sm:$0x7]
    %v93 = vlaneseq
    %v94 = vshrl.u32 %v93, 7
    %v95 = vsub.s32 0, %v94
    %v96 = vrot.slane %v92, %v95
    %97 = vmatprep.subr.mxu0 0.0
    %98 = vmatpush1.msra.mxu0 %v91
    %99 = vmatprep.subr.mxu0 0.0
    %100 = vmatpush1.msra.mxu0 %v90
    %101 = vmatprep.subr.mxu0 0.0
    %102 = vmatpush1.msra.mxu0 %v89
    %103 = vmatprep.subr.mxu0 0.0
    %104 = vmatpush1.msra.mxu0 %v88
    %105 = vmatprep.subr.mxu0 0.0
    %106 = vmatpush1.msra.mxu0 %v87
    %107 = vmatprep.subr.mxu0 0.0
    %108 = vmatpush1.msra.mxu0 %v86
    %109 = vmatprep.subr.mxu0 0.0
    %110 = vmatpush1.msra.mxu0 %v85
    %111 = vmatprep.subr.mxu0 0.0
    %112 = vmatpush1.msra.mxu0 %v84
    %113 = vmatprep.subr.mxu0 0.0
    %114 = vmatpush1.msra.mxu0 %v83
    %115 = vmatprep.subr.mxu0 0.0
    %116 = vmatpush1.msra.mxu0 %v82
    %117 = vmatprep.subr.mxu0 0.0
    %118 = vmatpush1.msra.mxu0 %v81
    %119 = vmatprep.subr.mxu0 0.0
    %120 = vmatpush1.msra.mxu0 %v80
    %121 = vmatprep.subr.mxu0 0.0
    %122 = vmatpush1.msra.mxu0 %v79
    %123 = vmatprep.subr.mxu0 0.0
    %124 = vmatpush1.msra.mxu0 %v78
    %125 = vmatprep.subr.mxu0 0.0
    %126 = vmatpush1.msra.mxu0 %v77
    %127 = vmatprep.subr.mxu0 0.0
    %128 = vmatpush1.msra.mxu0 %v76
    %129 = vmatprep.subr.mxu0 0.0
    %130 = vmatpush2.msra.mxu0 0.0
    %131 = vmatprep.subr.mxu0 0.0
    %132 = vmatpush2.msra.mxu0 0.0
    %133 = vmatprep.subr.mxu0 0.0
    %134 = vmatpush2.msra.mxu0 0.0
    %135 = vmatprep.subr.mxu0 0.0
    %136 = vmatpush2.msra.mxu0 0.0
    %137 = vmatprep.subr.mxu0 0.0
    %138 = vmatpush2.msra.mxu0 0.0
    %139 = vmatprep.subr.mxu0 0.0
    %140 = vmatpush2.msra.mxu0 0.0
    %141 = vmatprep.subr.mxu0 0.0
    %142 = vmatpush2.msra.mxu0 0.0
    %143 = vmatprep.subr.mxu0 0.0
    %144 = vmatpush2.msra.mxu0 0.0
    %145 = vmatprep.subr.mxu0 0.0
    %146 = vmatpush2.msra.mxu0 0.0
    %147 = vmatprep.subr.mxu0 0.0
    %148 = vmatpush2.msra.mxu0 0.0
    %149 = vmatprep.subr.mxu0 0.0
    %150 = vmatpush2.msra.mxu0 0.0
    %151 = vmatprep.subr.mxu0 0.0
    %152 = vmatpush2.msra.mxu0 0.0
    %153 = vmatprep.subr.mxu0 0.0
    %154 = vmatpush2.msra.mxu0 0.0
    %155 = vmatprep.subr.mxu0 0.0
    %156 = vmatpush2.msra.mxu0 0.0
    %157 = vmatprep.subr.mxu0 0.0
    %158 = vmatpush2.msra.mxu0 0.0
    %159 = vmatprep.subr.mxu0 0.0
    %160 = vmatpush2.msra.mxu0 0.0
    %161 = vmatprep.mubr.f32.mxu0 0.0
    %162 = vmatmul.mubr.f32.gmra.mxu0 %v74
    %v163 = vpop.f32.mrf.mxu0
    %v164 = vadd.f32 %v96, %v163
    %v165 = vpop.f32.mrf.mxu0
    %166 = vmatprep.mubr.f32.mxu0 0.0
    %167 = vmatmul.mubr.f32.gmra.mxu0 %v75
    %v168 = vpop.f32.mrf.mxu0
    %v169 = vadd.f32 %v96, %v168
    %v170 = vpop.f32.mrf.mxu0
    %171 = vdwg.mxu0
    %172 = vadd.xlane.f32.xlu0 %v164
    %v173 = vpop.xlane.xlu0 %172
    %174 = vadd.xlane.f32.xlu0 %v169
    %v175 = vpop.xlane.xlu0 %174
    %v176 = vmul.f32 %v173, 0.015625
    %v177 = vmul.f32 %v175, 0.015625
    %v178 = vsub.f32 %v164, %v176
    %v179 = vsub.f32 %v169, %v177
    %v180 = vlaneseq
    %v181 = vand.u32 %v180, 127
    %vm182 = vcmp.lt.s32.totalorder %v181, 64
    %v183 = vsel %vm182, %v178, 0.0
    %v184 = vsel %vm182, %v179, 0.0
    %v185 = vmul.f32 %v183, %v183
    %v186 = vmul.f32 %v184, %v184
    %187 = vadd.xlane.f32.xlu0 %v185
    %v188 = vpop.xlane.xlu0 %187
    %189 = vadd.xlane.f32.xlu0 %v186
    %v190 = vpop.xlane.xlu0 %189
    %v191 = vmul.f32 %v188, 0.015625
    %v192 = vmul.f32 %v190, 0.015625
    %v193 = vadd.f32 %v191, 1e-05
    %v194 = vadd.f32 %v192, 1e-05
    %v195 = vrsqrt.pop %v193
    %v196 = vrsqrt.pop %v194
    %v197 = vmul.f32 %v183, %v195
    %v198 = vmul.f32 %v184, %v196
    %v199 = vlaneseq
    %v200 = vshrl.u32 %v199, 7
    %v201 = vsub.s32 1, %v200
    %v202 = vrot.slane %v92, %v201
    %v203 = vmul.f32 %v197, %v202
    %v204 = vmul.f32 %v198, %v202
    %v205 = vlaneseq
    %v206 = vshrl.u32 %v205, 7
    %v207 = vsub.s32 2, %v206
    %v208 = vrot.slane %v92, %v207
    %v209 = vadd.f32 %v203, %v208
    %v210 = vadd.f32 %v204, %v208
    %v211 = vmax.f32 %v209, 0.0
    %v212 = vmax.f32 %v210, 0.0
    %v213 = vld [vmem:[#allocation8] sm:$0xff]
    %v214 = vld [vmem:[#allocation8 + $0x8] sm:$0xff]
    %v215 = vld [vmem:[#allocation8 + $0x10] sm:$0xff]
    %v216 = vld [vmem:[#allocation8 + $0x18] sm:$0xff]
    %v217 = vld [vmem:[#allocation8 + $0x20] sm:$0xff]
    %v218 = vld [vmem:[#allocation8 + $0x28] sm:$0xff]
    %v219 = vld [vmem:[#allocation8 + $0x30] sm:$0xff]
    %v220 = vld [vmem:[#allocation8 + $0x38] sm:$0xff]
    %v221 = vld [vmem:[#allocation8 + $0x40] sm:$0xff]
    %v222 = vld [vmem:[#allocation8 + $0x48] sm:$0xff]
    %v223 = vld [vmem:[#allocation8 + $0x50] sm:$0xff]
    %v224 = vld [vmem:[#allocation8 + $0x58] sm:$0xff]
    %v225 = vld [vmem:[#allocation8 + $0x60] sm:$0xff]
    %v226 = vld [vmem:[#allocation8 + $0x68] sm:$0xff]
    %v227 = vld [vmem:[#allocation8 + $0x70] sm:$0xff]
    %v228 = vld [vmem:[#allocation8 + $0x78] sm:$0xff]
    %v229 = vld [vmem:[%s4] sm:$0x1]
    %v231 = vlaneseq
    %v232 = vshrl.u32 %v231, 7
    %v233 = vsub.s32 0, %v232
    %v234 = vrot.slane %v229, %v233
    %236 = vmatprep.subr.mxu0 0.0
    %237 = vmatpush1.msra.mxu0 %v228
    %238 = vmatprep.subr.mxu0 0.0
    %239 = vmatpush1.msra.mxu0 %v227
    %240 = vmatprep.subr.mxu0 0.0
    %241 = vmatpush1.msra.mxu0 %v226
    %242 = vmatprep.subr.mxu0 0.0
    %243 = vmatpush1.msra.mxu0 %v225
    %244 = vmatprep.subr.mxu0 0.0
    %245 = vmatpush1.msra.mxu0 %v224
    %246 = vmatprep.subr.mxu0 0.0
    %247 = vmatpush1.msra.mxu0 %v223
    %248 = vmatprep.subr.mxu0 0.0
    %249 = vmatpush1.msra.mxu0 %v222
    %250 = vmatprep.subr.mxu0 0.0
    %251 = vmatpush1.msra.mxu0 %v221
    %252 = vmatprep.subr.mxu0 0.0
    %253 = vmatpush1.msra.mxu0 %v220
    %254 = vmatprep.subr.mxu0 0.0
    %255 = vmatpush1.msra.mxu0 %v219
    %256 = vmatprep.subr.mxu0 0.0
    %257 = vmatpush1.msra.mxu0 %v218
    %258 = vmatprep.subr.mxu0 0.0
    %259 = vmatpush1.msra.mxu0 %v217
    %260 = vmatprep.subr.mxu0 0.0
    %261 = vmatpush1.msra.mxu0 %v216
    %262 = vmatprep.subr.mxu0 0.0
    %263 = vmatpush1.msra.mxu0 %v215
    %264 = vmatprep.subr.mxu0 0.0
    %265 = vmatpush1.msra.mxu0 %v214
    %266 = vmatprep.subr.mxu0 0.0
    %267 = vmatpush1.msra.mxu0 %v213
    %268 = vmatprep.subr.mxu0 0.0
    %269 = vmatpush2.msra.mxu0 0.0
    %270 = vmatprep.subr.mxu0 0.0
    %271 = vmatpush2.msra.mxu0 0.0
    %272 = vmatprep.subr.mxu0 0.0
    %273 = vmatpush2.msra.mxu0 0.0
    %274 = vmatprep.subr.mxu0 0.0
    %275 = vmatpush2.msra.mxu0 0.0
    %276 = vmatprep.subr.mxu0 0.0
    %277 = vmatpush2.msra.mxu0 0.0
    %278 = vmatprep.subr.mxu0 0.0
    %279 = vmatpush2.msra.mxu0 0.0
    %280 = vmatprep.subr.mxu0 0.0
    %281 = vmatpush2.msra.mxu0 0.0
    %282 = vmatprep.subr.mxu0 0.0
    %283 = vmatpush2.msra.mxu0 0.0
    %284 = vmatprep.subr.mxu0 0.0
    %285 = vmatpush2.msra.mxu0 0.0
    %286 = vmatprep.subr.mxu0 0.0
    %287 = vmatpush2.msra.mxu0 0.0
    %288 = vmatprep.subr.mxu0 0.0
    %289 = vmatpush2.msra.mxu0 0.0
    %290 = vmatprep.subr.mxu0 0.0
    %291 = vmatpush2.msra.mxu0 0.0
    %292 = vmatprep.subr.mxu0 0.0
    %293 = vmatpush2.msra.mxu0 0.0
    %294 = vmatprep.subr.mxu0 0.0
    %295 = vmatpush2.msra.mxu0 0.0
    %296 = vmatprep.subr.mxu0 0.0
    %297 = vmatpush2.msra.mxu0 0.0
    %298 = vmatprep.subr.mxu0 0.0
    %299 = vmatpush2.msra.mxu0 0.0
    %300 = vmatprep.mubr.f32.mxu0 0.0
    %301 = vmatmul.mubr.f32.gmra.mxu0 %v211
    %v302 = vpop.f32.mrf.mxu0
    %v303 = vadd.f32 %v234, %v302
    %v304 = vpop.f32.mrf.mxu0
    %305 = vmatprep.mubr.f32.mxu0 0.0
    %306 = vmatmul.mubr.f32.gmra.mxu0 %v212
    %v307 = vpop.f32.mrf.mxu0
    %v308 = vadd.f32 %v234, %v307
    %v309 = vpop.f32.mrf.mxu0
    %310 = vdwg.mxu0
    %311 = vst [vmem:[#allocation10] sm:$0xff] %v303
    %312 = vst [vmem:[#allocation10 + $0x8] sm:$0xff] %v308
    // Predicated region
    $region38: #{tpu_custom_call.1} parent=1 // pred_check
      _
    $region39: #{tpu_custom_call.1} parent=1 // pred_check_branch
      %314 = sbr.rel (0) target = $region41
    $region40: #{tpu_custom_call.1} parent=1 // pred_region
      %s316 = ssub.s32 256, 256
      %317 = vsyncadd [#allocation4], %s316
      %s318 = sshll.u32 [#allocation10], 4
      %s319 = int_to_ptr.vmem [resolvable:$true] %s318
      %324 = dma.vmem_to_hbm [thread:$0]  %s319, 256, %s5, [#allocation4], 128, 128, 8
    $region41: #{tpu_custom_call.1} parent=1 // pred_fallthru
      _
    // Predicated region
    $region42: #{tpu_custom_call.1} parent=1 // pred_check
      _
    $region43: #{tpu_custom_call.1} parent=1 // pred_check_branch
      %326 = sbr.rel (0) target = $region45
    $region44: #{tpu_custom_call.1} parent=1 // pred_region
      %327 = dma.done [#allocation4], 256
    $region45: #{tpu_custom_call.1} parent=1 // pred_fallthru
      _
    %328 = vsyncpa [#allocation3], 1
    %329 = vsyncpa [#allocation6], 1
    %330 = vsyncpa [#allocation9], 1
    %331 = vsyncpa [#allocation4], 1

// kernel: tpu_custom_call.1
$region0: #{tpu_custom_call.1}
  #allocation0 [shape = 'u32[]', space=smem, size = 0x4, offset = 0x4, fixed_abs, tag = 'smem constant byte address 0x4 - core index']
  #allocation1 [shape = 'u32[144,128]{1,0:T(1,128)}', space=vmem, size = 0x12000, scoped, tag = 'internal scratch']
  %s0 = inlined_call_operand.hbm [shape: f32[16,128], index: 0, kind: input, shape index: {}]
  %s1 = inlined_call_operand.hbm [shape: f32[128,128], index: 1, kind: input, shape index: {}]
  %s2 = inlined_call_operand.hbm [shape: f32[3,128], index: 2, kind: input, shape index: {}]
  %s3 = inlined_call_operand.hbm [shape: f32[128,128], index: 3, kind: input, shape index: {}]
  %s4 = inlined_call_operand.vmem [shape: f32[1,128], index: 4, kind: input, shape index: {}]
  %s5 = inlined_call_operand.hbm [shape: f32[16,128], index: 5, kind: output, shape index: {}]
  %s6 = sld [smem:[#allocation0]]
  $region46: #{tpu_custom_call.1} parent=0
    _
  %s8 = ssub.s32 1, %s6
  %s9 = scalar_select 0, %s8, %s6
  $region1: #{tpu_custom_call.1} parent=0
    #allocation2 [shape = 'u8[8192]{0}', space=vmem, size = 0x2000, scoped, tag = 'input window, operand 0, single buffered']
    #allocation3 [shape = 's32[1]{0}', space=sflag, size = 0x4, scoped, tag = 'scoped memory for tpu_custom_call.1']
    #allocation4 [shape = 's32[1]{0}', space=sflag, size = 0x4, scoped, tag = 'scoped memory for tpu_custom_call.1']
    #allocation5 [shape = 'u8[65536]{0}', space=vmem, size = 0x10000, scoped, tag = 'input window, operand 1, single buffered']
    #allocation6 [shape = 's32[1]{0}', space=sflag, size = 0x4, scoped, tag = 'scoped memory for tpu_custom_call.1']
    #allocation7 [shape = 'u8[2048]{0}', space=vmem, size = 0x800, scoped, tag = 'input window, operand 2, single buffered']
    #allocation8 [shape = 'u8[65536]{0}', space=vmem, size = 0x10000, scoped, tag = 'input window, operand 3, single buffered']
    #allocation9 [shape = 's32[1]{0}', space=sflag, size = 0x4, scoped, tag = 'scoped memory for tpu_custom_call.1']
    #allocation10 [shape = 'u8[8192]{0}', space=vmem, size = 0x2000, scoped, tag = 'output window, operand 0, single buffered']
    %10 = vsyncpa [#allocation3], 0
    %11 = vsyncpa [#allocation6], 0
    %12 = vsyncpa [#allocation9], 0
    %13 = vsyncpa [#allocation4], 0
    // Predicated region
    $region2: #{tpu_custom_call.1} parent=1 // pred_check
      _
    $region3: #{tpu_custom_call.1} parent=1 // pred_check_branch
      %15 = sbr.rel (0) target = $region5
    $region4: #{tpu_custom_call.1} parent=1 // pred_region
      %s17 = ssub.s32 256, 256
      %18 = vsyncadd [#allocation3], %s17
      %s19 = sshll.u32 [#allocation2], 4
      %s20 = int_to_ptr.vmem [resolvable:$true] %s19
      %25 = dma.hbm_to_vmem [thread:$0]  %s0, 256, %s20, [#allocation3], 128, 128, 8
    $region5: #{tpu_custom_call.1} parent=1 // pred_fallthru
      _
    // Predicated region
    $region6: #{tpu_custom_call.1} parent=1 // pred_check
      _
    $region7: #{tpu_custom_call.1} parent=1 // pred_check_branch
      %27 = sbr.rel (0) target = $region9
    $region8: #{tpu_custom_call.1} parent=1 // pred_region
      %s29 = ssub.s32 2048, 2048
      %30 = vsyncadd [#allocation6], %s29
      %s31 = sshll.u32 [#allocation5], 4
      %s32 = int_to_ptr.vmem [resolvable:$true] %s31
      %37 = dma.hbm_to_vmem [thread:$0]  %s1, 2048, %s32, [#allocation6], 128, 128, 8
    $region9: #{tpu_custom_call.1} parent=1 // pred_fallthru
      _
    // Predicated region
    $region10: #{tpu_custom_call.1} parent=1 // pred_check
      _
    $region11: #{tpu_custom_call.1} parent=1 // pred_check_branch
      %39 = sbr.rel (0) target = $region13
    $region12: #{tpu_custom_call.1} parent=1 // pred_region
      %s41 = ssub.s32 64, 64
      %42 = vsyncadd [#allocation6], %s41
      %s44 = sshll.u32 [#allocation7], 4
      %s45 = int_to_ptr.vmem [resolvable:$true] %s44
      %47 = dma.hbm_to_vmem [thread:$0]  %s2, 64, %s45, [#allocation6]
    $region13: #{tpu_custom_call.1} parent=1 // pred_fallthru
      _
    // Predicated region
    $region14: #{tpu_custom_call.1} parent=1 // pred_check
      _
    $region15: #{tpu_custom_call.1} parent=1 // pred_check_branch
      %49 = sbr.rel (0) target = $region17
    $region16: #{tpu_custom_call.1} parent=1 // pred_region
      %s51 = ssub.s32 2048, 2048
      %52 = vsyncadd [#allocation9], %s51
      %s53 = sshll.u32 [#allocation8], 4
      %s54 = int_to_ptr.vmem [resolvable:$true] %s53
      %59 = dma.hbm_to_vmem [thread:$0]  %s3, 2048, %s54, [#allocation9], 128, 128, 8
    $region17: #{tpu_custom_call.1} parent=1 // pred_fallthru
      _
    // Predicated region
    $region18: #{tpu_custom_call.1} parent=1 // pred_check
      _
    $region19: #{tpu_custom_call.1} parent=1 // pred_check_branch
      %61 = sbr.rel (0) target = $region21
    $region20: #{tpu_custom_call.1} parent=1 // pred_region
      _
    $region21: #{tpu_custom_call.1} parent=1 // pred_fallthru
      _
    // Predicated region
    $region22: #{tpu_custom_call.1} parent=1 // pred_check
      _
    $region23: #{tpu_custom_call.1} parent=1 // pred_check_branch
      %63 = sbr.rel (0) target = $region25
    $region24: #{tpu_custom_call.1} parent=1 // pred_region
      %64 = dma.done [#allocation3], 256
    $region25: #{tpu_custom_call.1} parent=1 // pred_fallthru
      _
    // Predicated region
    $region26: #{tpu_custom_call.1} parent=1 // pred_check
      _
    $region27: #{tpu_custom_call.1} parent=1 // pred_check_branch
      %66 = sbr.rel (0) target = $region29
    $region28: #{tpu_custom_call.1} parent=1 // pred_region
      %67 = dma.done [#allocation6], 2048
    $region29: #{tpu_custom_call.1} parent=1 // pred_fallthru
      _
    // Predicated region
    $region30: #{tpu_custom_call.1} parent=1 // pred_check
      _
    $region31: #{tpu_custom_call.1} parent=1 // pred_check_branch
      %69 = sbr.rel (0) target = $region33
    $region32: #{tpu_custom_call.1} parent=1 // pred_region
      %70 = dma.done [#allocation6], 64
    $region33: #{tpu_custom_call.1} parent=1 // pred_fallthru
      _
    // Predicated region
    $region34: #{tpu_custom_call.1} parent=1 // pred_check
      _
    $region35: #{tpu_custom_call.1} parent=1 // pred_check_branch
      %72 = sbr.rel (0) target = $region37
    $region36: #{tpu_custom_call.1} parent=1 // pred_region
      %73 = dma.done [#allocation9], 2048
    $region37: #{tpu_custom_call.1} parent=1 // pred_fallthru
      _
    %v74 = vld [vmem:[#allocation2] sm:$0xff]
    %v75 = vld [vmem:[#allocation2 + $0x8] sm:$0xff]
    %v76 = vld [vmem:[#allocation5] sm:$0xff]
    %v77 = vld [vmem:[#allocation5 + $0x8] sm:$0xff]
    %v78 = vld [vmem:[#allocation5 + $0x10] sm:$0xff]
    %v79 = vld [vmem:[#allocation5 + $0x18] sm:$0xff]
    %v80 = vld [vmem:[#allocation5 + $0x20] sm:$0xff]
    %v81 = vld [vmem:[#allocation5 + $0x28] sm:$0xff]
    %v82 = vld [vmem:[#allocation5 + $0x30] sm:$0xff]
    %v83 = vld [vmem:[#allocation5 + $0x38] sm:$0xff]
    %v84 = vld [vmem:[#allocation5 + $0x40] sm:$0xff]
    %v85 = vld [vmem:[#allocation5 + $0x48] sm:$0xff]
    %v86 = vld [vmem:[#allocation5 + $0x50] sm:$0xff]
    %v87 = vld [vmem:[#allocation5 + $0x58] sm:$0xff]
    %v88 = vld [vmem:[#allocation5 + $0x60] sm:$0xff]
    %v89 = vld [vmem:[#allocation5 + $0x68] sm:$0xff]
    %v90 = vld [vmem:[#allocation5 + $0x70] sm:$0xff]
    %v91 = vld [vmem:[#allocation5 + $0x78] sm:$0xff]
    %v92 = vld [vmem:[#allocation7] sm:$0x7]
    %v93 = vlaneseq
    %v94 = vshrl.u32 %v93, 7
    %v95 = vsub.s32 0, %v94
    %v96 = vrot.slane %v92, %v95
    %97 = vmatprep.subr.mxu0 0.0
    %98 = vmatpush1.msra.mxu0 %v91
    %99 = vmatprep.subr.mxu0 0.0
    %100 = vmatpush1.msra.mxu0 %v90
    %101 = vmatprep.subr.mxu0 0.0
    %102 = vmatpush1.msra.mxu0 %v89
    %103 = vmatprep.subr.mxu0 0.0
    %104 = vmatpush1.msra.mxu0 %v88
    %105 = vmatprep.subr.mxu0 0.0
    %106 = vmatpush1.msra.mxu0 %v87
    %107 = vmatprep.subr.mxu0 0.0
    %108 = vmatpush1.msra.mxu0 %v86
    %109 = vmatprep.subr.mxu0 0.0
    %110 = vmatpush1.msra.mxu0 %v85
    %111 = vmatprep.subr.mxu0 0.0
    %112 = vmatpush1.msra.mxu0 %v84
    %113 = vmatprep.subr.mxu0 0.0
    %114 = vmatpush1.msra.mxu0 %v83
    %115 = vmatprep.subr.mxu0 0.0
    %116 = vmatpush1.msra.mxu0 %v82
    %117 = vmatprep.subr.mxu0 0.0
    %118 = vmatpush1.msra.mxu0 %v81
    %119 = vmatprep.subr.mxu0 0.0
    %120 = vmatpush1.msra.mxu0 %v80
    %121 = vmatprep.subr.mxu0 0.0
    %122 = vmatpush1.msra.mxu0 %v79
    %123 = vmatprep.subr.mxu0 0.0
    %124 = vmatpush1.msra.mxu0 %v78
    %125 = vmatprep.subr.mxu0 0.0
    %126 = vmatpush1.msra.mxu0 %v77
    %127 = vmatprep.subr.mxu0 0.0
    %128 = vmatpush1.msra.mxu0 %v76
    %129 = vmatprep.subr.mxu0 0.0
    %130 = vmatpush2.msra.mxu0 0.0
    %131 = vmatprep.subr.mxu0 0.0
    %132 = vmatpush2.msra.mxu0 0.0
    %133 = vmatprep.subr.mxu0 0.0
    %134 = vmatpush2.msra.mxu0 0.0
    %135 = vmatprep.subr.mxu0 0.0
    %136 = vmatpush2.msra.mxu0 0.0
    %137 = vmatprep.subr.mxu0 0.0
    %138 = vmatpush2.msra.mxu0 0.0
    %139 = vmatprep.subr.mxu0 0.0
    %140 = vmatpush2.msra.mxu0 0.0
    %141 = vmatprep.subr.mxu0 0.0
    %142 = vmatpush2.msra.mxu0 0.0
    %143 = vmatprep.subr.mxu0 0.0
    %144 = vmatpush2.msra.mxu0 0.0
    %145 = vmatprep.subr.mxu0 0.0
    %146 = vmatpush2.msra.mxu0 0.0
    %147 = vmatprep.subr.mxu0 0.0
    %148 = vmatpush2.msra.mxu0 0.0
    %149 = vmatprep.subr.mxu0 0.0
    %150 = vmatpush2.msra.mxu0 0.0
    %151 = vmatprep.subr.mxu0 0.0
    %152 = vmatpush2.msra.mxu0 0.0
    %153 = vmatprep.subr.mxu0 0.0
    %154 = vmatpush2.msra.mxu0 0.0
    %155 = vmatprep.subr.mxu0 0.0
    %156 = vmatpush2.msra.mxu0 0.0
    %157 = vmatprep.subr.mxu0 0.0
    %158 = vmatpush2.msra.mxu0 0.0
    %159 = vmatprep.subr.mxu0 0.0
    %160 = vmatpush2.msra.mxu0 0.0
    %161 = vmatprep.mubr.f32.mxu0 0.0
    %162 = vmatmul.mubr.f32.gmra.mxu0 %v74
    %v163 = vpop.f32.mrf.mxu0
    %v164 = vadd.f32 %v96, %v163
    %v165 = vpop.f32.mrf.mxu0
    %166 = vmatprep.mubr.f32.mxu0 0.0
    %167 = vmatmul.mubr.f32.gmra.mxu0 %v75
    %v168 = vpop.f32.mrf.mxu0
    %v169 = vadd.f32 %v96, %v168
    %v170 = vpop.f32.mrf.mxu0
    %171 = vdwg.mxu0
    %172 = vadd.xlane.f32.xlu0 %v164
    %v173 = vpop.xlane.xlu0 %172
    %174 = vadd.xlane.f32.xlu0 %v169
    %v175 = vpop.xlane.xlu0 %174
    %v176 = vmul.f32 %v173, 0.015625
    %v177 = vmul.f32 %v175, 0.015625
    %v178 = vsub.f32 %v164, %v176
    %v179 = vsub.f32 %v169, %v177
    %v180 = vlaneseq
    %v181 = vand.u32 %v180, 127
    %vm182 = vcmp.lt.s32.totalorder %v181, 64
    %v183 = vsel %vm182, %v178, 0.0
    %v184 = vsel %vm182, %v179, 0.0
    %v185 = vmul.f32 %v183, %v183
    %v186 = vmul.f32 %v184, %v184
    %187 = vadd.xlane.f32.xlu0 %v185
    %v188 = vpop.xlane.xlu0 %187
    %189 = vadd.xlane.f32.xlu0 %v186
    %v190 = vpop.xlane.xlu0 %189
    %v191 = vmul.f32 %v188, 0.015625
    %v192 = vmul.f32 %v190, 0.015625
    %v193 = vadd.f32 %v191, 1e-05
    %v194 = vadd.f32 %v192, 1e-05
    %v195 = vrsqrt.pop %v193
    %v196 = vrsqrt.pop %v194
    %v197 = vmul.f32 %v183, %v195
    %v198 = vmul.f32 %v184, %v196
    %v199 = vlaneseq
    %v200 = vshrl.u32 %v199, 7
    %v201 = vsub.s32 1, %v200
    %v202 = vrot.slane %v92, %v201
    %v203 = vmul.f32 %v197, %v202
    %v204 = vmul.f32 %v198, %v202
    %v205 = vlaneseq
    %v206 = vshrl.u32 %v205, 7
    %v207 = vsub.s32 2, %v206
    %v208 = vrot.slane %v92, %v207
    %v209 = vadd.f32 %v203, %v208
    %v210 = vadd.f32 %v204, %v208
    %v211 = vmax.f32 %v209, 0.0
    %v212 = vmax.f32 %v210, 0.0
    %v213 = vld [vmem:[#allocation8] sm:$0xff]
    %v214 = vld [vmem:[#allocation8 + $0x8] sm:$0xff]
    %v215 = vld [vmem:[#allocation8 + $0x10] sm:$0xff]
    %v216 = vld [vmem:[#allocation8 + $0x18] sm:$0xff]
    %v217 = vld [vmem:[#allocation8 + $0x20] sm:$0xff]
    %v218 = vld [vmem:[#allocation8 + $0x28] sm:$0xff]
    %v219 = vld [vmem:[#allocation8 + $0x30] sm:$0xff]
    %v220 = vld [vmem:[#allocation8 + $0x38] sm:$0xff]
    %v221 = vld [vmem:[#allocation8 + $0x40] sm:$0xff]
    %v222 = vld [vmem:[#allocation8 + $0x48] sm:$0xff]
    %v223 = vld [vmem:[#allocation8 + $0x50] sm:$0xff]
    %v224 = vld [vmem:[#allocation8 + $0x58] sm:$0xff]
    %v225 = vld [vmem:[#allocation8 + $0x60] sm:$0xff]
    %v226 = vld [vmem:[#allocation8 + $0x68] sm:$0xff]
    %v227 = vld [vmem:[#allocation8 + $0x70] sm:$0xff]
    %v228 = vld [vmem:[#allocation8 + $0x78] sm:$0xff]
    %v229 = vld [vmem:[%s4] sm:$0x1]
    %v231 = vlaneseq
    %v232 = vshrl.u32 %v231, 7
    %v233 = vsub.s32 0, %v232
    %v234 = vrot.slane %v229, %v233
    %236 = vmatprep.subr.mxu0 0.0
    %237 = vmatpush1.msra.mxu0 %v228
    %238 = vmatprep.subr.mxu0 0.0
    %239 = vmatpush1.msra.mxu0 %v227
    %240 = vmatprep.subr.mxu0 0.0
    %241 = vmatpush1.msra.mxu0 %v226
    %242 = vmatprep.subr.mxu0 0.0
    %243 = vmatpush1.msra.mxu0 %v225
    %244 = vmatprep.subr.mxu0 0.0
    %245 = vmatpush1.msra.mxu0 %v224
    %246 = vmatprep.subr.mxu0 0.0
    %247 = vmatpush1.msra.mxu0 %v223
    %248 = vmatprep.subr.mxu0 0.0
    %249 = vmatpush1.msra.mxu0 %v222
    %250 = vmatprep.subr.mxu0 0.0
    %251 = vmatpush1.msra.mxu0 %v221
    %252 = vmatprep.subr.mxu0 0.0
    %253 = vmatpush1.msra.mxu0 %v220
    %254 = vmatprep.subr.mxu0 0.0
    %255 = vmatpush1.msra.mxu0 %v219
    %256 = vmatprep.subr.mxu0 0.0
    %257 = vmatpush1.msra.mxu0 %v218
    %258 = vmatprep.subr.mxu0 0.0
    %259 = vmatpush1.msra.mxu0 %v217
    %260 = vmatprep.subr.mxu0 0.0
    %261 = vmatpush1.msra.mxu0 %v216
    %262 = vmatprep.subr.mxu0 0.0
    %263 = vmatpush1.msra.mxu0 %v215
    %264 = vmatprep.subr.mxu0 0.0
    %265 = vmatpush1.msra.mxu0 %v214
    %266 = vmatprep.subr.mxu0 0.0
    %267 = vmatpush1.msra.mxu0 %v213
    %268 = vmatprep.subr.mxu0 0.0
    %269 = vmatpush2.msra.mxu0 0.0
    %270 = vmatprep.subr.mxu0 0.0
    %271 = vmatpush2.msra.mxu0 0.0
    %272 = vmatprep.subr.mxu0 0.0
    %273 = vmatpush2.msra.mxu0 0.0
    %274 = vmatprep.subr.mxu0 0.0
    %275 = vmatpush2.msra.mxu0 0.0
    %276 = vmatprep.subr.mxu0 0.0
    %277 = vmatpush2.msra.mxu0 0.0
    %278 = vmatprep.subr.mxu0 0.0
    %279 = vmatpush2.msra.mxu0 0.0
    %280 = vmatprep.subr.mxu0 0.0
    %281 = vmatpush2.msra.mxu0 0.0
    %282 = vmatprep.subr.mxu0 0.0
    %283 = vmatpush2.msra.mxu0 0.0
    %284 = vmatprep.subr.mxu0 0.0
    %285 = vmatpush2.msra.mxu0 0.0
    %286 = vmatprep.subr.mxu0 0.0
    %287 = vmatpush2.msra.mxu0 0.0
    %288 = vmatprep.subr.mxu0 0.0
    %289 = vmatpush2.msra.mxu0 0.0
    %290 = vmatprep.subr.mxu0 0.0
    %291 = vmatpush2.msra.mxu0 0.0
    %292 = vmatprep.subr.mxu0 0.0
    %293 = vmatpush2.msra.mxu0 0.0
    %294 = vmatprep.subr.mxu0 0.0
    %295 = vmatpush2.msra.mxu0 0.0
    %296 = vmatprep.subr.mxu0 0.0
    %297 = vmatpush2.msra.mxu0 0.0
    %298 = vmatprep.subr.mxu0 0.0
    %299 = vmatpush2.msra.mxu0 0.0
    %300 = vmatprep.mubr.f32.mxu0 0.0
    %301 = vmatmul.mubr.f32.gmra.mxu0 %v211
    %v302 = vpop.f32.mrf.mxu0
    %v303 = vadd.f32 %v234, %v302
    %v304 = vpop.f32.mrf.mxu0
    %305 = vmatprep.mubr.f32.mxu0 0.0
    %306 = vmatmul.mubr.f32.gmra.mxu0 %v212
    %v307 = vpop.f32.mrf.mxu0
    %v308 = vadd.f32 %v234, %v307
    %v309 = vpop.f32.mrf.mxu0
    %310 = vdwg.mxu0
    %311 = vst [vmem:[#allocation10] sm:$0xff] %v303
    %312 = vst [vmem:[#allocation10 + $0x8] sm:$0xff] %v308
    // Predicated region
    $region38: #{tpu_custom_call.1} parent=1 // pred_check
      _
    $region39: #{tpu_custom_call.1} parent=1 // pred_check_branch
      %314 = sbr.rel (0) target = $region41
    $region40: #{tpu_custom_call.1} parent=1 // pred_region
      %s316 = ssub.s32 256, 256
      %317 = vsyncadd [#allocation4], %s316
      %s318 = sshll.u32 [#allocation10], 4
      %s319 = int_to_ptr.vmem [resolvable:$true] %s318
      %324 = dma.vmem_to_hbm [thread:$0]  %s319, 256, %s5, [#allocation4], 128, 128, 8
    $region41: #{tpu_custom_call.1} parent=1 // pred_fallthru
      _
    // Predicated region
    $region42: #{tpu_custom_call.1} parent=1 // pred_check
      _
    $region43: #{tpu_custom_call.1} parent=1 // pred_check_branch
      %326 = sbr.rel (0) target = $region45
    $region44: #{tpu_custom_call.1} parent=1 // pred_region
      %327 = dma.done [#allocation4], 256
    $region45: #{tpu_custom_call.1} parent=1 // pred_fallthru
      _
    %328 = vsyncpa [#allocation3], 1
    %329 = vsyncpa [#allocation6], 1
    %330 = vsyncpa [#allocation9], 1
    %331 = vsyncpa [#allocation4], 1

</llo_original>
